<compile_context>
chip_gen: v6e
topology: v6e:2x2x1
jax: 0.10.0
libtpu: 0.0.40
codegen_flags: <defaults>
</compile_context>

<pallas_src>
import functools

import jax
import jax.numpy as jnp
import numpy as np
from jax.experimental import pallas as pl
from jax.experimental.pallas import tpu as pltpu


def _blur_fir_kernel(x_ref, o_ref, pad_ref, hz_ref, *,
                     taps, scale, H, W, Ho, Wo, p0):
    """One grid step: blur a (Cblk, H, W) block into (Cblk, Ho, Wo).

    x_ref   : (Cblk, H,  W )  input block (any float dtype)
    o_ref   : (Cblk, Ho, Wo)  output block
    pad_ref : (Cblk, Hp, Wp)  f32 scratch: zero-padded input block
    hz_ref  : (Cblk, Hp, Wo)  f32 scratch: horizontal 1-D pass result
    taps    : tuple of Python floats = normalized, flipped 1-D taps
    scale   : upsample_factor**2 (applied exactly once, in the vertical pass)
    """
    ntaps = len(taps)

    # --- fused zero padding: build padded block in VMEM (no extra HBM pass) --
    pad_ref[...] = jnp.zeros_like(pad_ref)
    pad_ref[:, p0:p0 + H, p0:p0 + W] = x_ref[...].astype(jnp.float32)

    # --- horizontal 1-D pass: static sub-slices of the VMEM tile (shifted
    #     loads, no lane rotates); fully unrolled compile-time taps ----------
    acc = pad_ref[:, :, 0:Wo] * taps[0]
    for b in range(1, ntaps):
        acc = acc + pad_ref[:, :, b:b + Wo] * taps[b]
    hz_ref[...] = acc

    # --- vertical 1-D pass (upsample scale folded in once) ------------------
    out = hz_ref[:, 0:Ho, :] * (taps[0] * scale)
    for a in range(1, ntaps):
        out = out + hz_ref[:, a:a + Ho, :] * (taps[a] * scale)
    o_ref[...] = out.astype(o_ref.dtype)


def _pick_channel_block(BC, H, W, Hp, Wp, Ho, Wo, itemsize,
                        budget_bytes=24 * 1024 * 1024):
    """Largest divisor of BC whose VMEM footprint fits the budget
    (sized for v7x's 64 MiB VMEM; v5e/v6e have much more headroom)."""
    per_c = (2 * itemsize * H * W        # double-buffered input block
             + 2 * itemsize * Ho * Wo    # double-buffered output block
             + 4 * Hp * Wp               # f32 padded scratch
             + 4 * Hp * Wo)              # f32 horizontal-pass scratch
    max_c = max(1, int(budget_bytes // max(per_c, 1)))
    cblk = min(BC, max_c)
    while BC % cblk != 0:
        cblk -= 1
    return cblk


def blur(x, kernel, pad, upsample_factor=1):
    """Pallas-TPU forward of gpen_model.Blur (NCHW, up=down=1)."""
    B, C, H, W = x.shape
    p0, p1 = int(pad[0]), int(pad[1])
    assert p0 >= 0 and p1 >= 0, "negative pads not supported"
    # TODO(synk): negative upfirdn2d pads (cropping) are not implemented.

    k1 = np.asarray(kernel, dtype=np.float64)
    assert k1.ndim == 1, "Blur uses a 1-D (separable) kernel"
    # TODO(synk): non-separable 2-D kernels would need a k*k accumulation path.

    ntaps = int(k1.shape[0])
    taps = tuple(float(v) for v in (k1 / k1.sum())[::-1])   # normalize + flip
    scale = float(upsample_factor) ** 2

    Hp, Wp = H + p0 + p1, W + p0 + p1
    Ho, Wo = Hp - ntaps + 1, Wp - ntaps + 1
    assert Ho > 0 and Wo > 0, "blur output would be empty"

    BC = B * C
    cblk = _pick_channel_block(BC, H, W, Hp, Wp, Ho, Wo,
                               jnp.dtype(x.dtype).itemsize)

    kernel_fn = functools.partial(
        _blur_fir_kernel, taps=taps, scale=scale,
        H=H, W=W, Ho=Ho, Wo=Wo, p0=p0)

    out = pl.pallas_call(
        kernel_fn,
        out_shape=jax.ShapeDtypeStruct((BC, Ho, Wo), x.dtype),
        grid_spec=pltpu.PrefetchScalarGridSpec(
            num_scalar_prefetch=0,
            grid=(BC // cblk,),
            in_specs=[pl.BlockSpec((cblk, H, W), lambda i: (i, 0, 0))],
            out_specs=pl.BlockSpec((cblk, Ho, Wo), lambda i: (i, 0, 0)),
            scratch_shapes=[
                pltpu.VMEM((cblk, Hp, Wp), jnp.float32),
                pltpu.VMEM((cblk, Hp, Wo), jnp.float32),
            ]),
        compiler_params=pltpu.CompilerParams(
            dimension_semantics=("parallel",),
            vmem_limit_bytes=64 * 1024 * 1024),
    )(x.reshape(BC, H, W))

    return out.reshape(B, C, Ho, Wo)


def blur_reference(x, kernel, pad, upsample_factor=1):
    """Pure-JAX reference matching PyTorch upfirdn2d(up=1, down=1, pad=pad)."""
    k1 = jnp.asarray(kernel, dtype=jnp.float32)
    k2 = jnp.outer(k1, k1)
    k2 = k2 / jnp.sum(k2)
    if upsample_factor > 1:
        k2 = k2 * (upsample_factor ** 2)
    B, C, H, W = x.shape
    xp = jnp.pad(x.astype(jnp.float32),
                 ((0, 0), (0, 0), (pad[0], pad[1]), (pad[0], pad[1])))
    w = jnp.flip(k2, (0, 1))[None, None, :, :]               # (1, 1, kh, kw)
    xp = xp.reshape(B * C, 1, xp.shape[2], xp.shape[3])
    out = jax.lax.conv_general_dilated(
        xp, w, window_strides=(1, 1), padding="VALID",
        dimension_numbers=("NCHW", "OIHW", "NCHW"))
    return out.reshape(B, C, out.shape[2], out.shape[3]).astype(x.dtype)


if __name__ == "__main__":
    key = jax.random.PRNGKey(0)
    B, C, H, W = 2, 4, 16, 16
    blur_kernel = [1.0, 3.0, 3.0, 1.0]

    # Config 1: "upsample" Blur (pad=(2,1), upsample_factor=2), f32 I/O.
    x32 = jax.random.normal(key, (B, C, H, W), dtype=jnp.float32)
    out1 = jax.block_until_ready(blur(x32, blur_kernel, (2, 1), upsample_factor=2))
    ref1 = jax.block_until_ready(blur_reference(x32, blur_kernel, (2, 1), 2))
    assert out1.shape == ref1.shape, (out1.shape, ref1.shape)
    err1 = float(jnp.max(jnp.abs(out1 - ref1)))
    assert err1 < 1e-4, f"f32 max abs err {err1}"

    # Config 2: plain Blur (pad=(1,1)), bf16 HBM I/O, f32 compute in-kernel.
    xbf = x32.astype(jnp.bfloat16)
    out2 = jax.block_until_ready(blur(xbf, blur_kernel, (1, 1), upsample_factor=1))
    ref2 = jax.block_until_ready(blur_reference(xbf, blur_kernel, (1, 1), 1))
    assert out2.shape == ref2.shape, (out2.shape, ref2.shape)
    err2 = float(jnp.max(jnp.abs(out2.astype(jnp.float32)
                                 - ref2.astype(jnp.float32))))
    assert err2 < 5e-2, f"bf16 max abs err {err2}"

    print("KERNEL_OK")
</pallas_src>

<mosaic_0001>
module attributes {stable_mosaic.version = 11 : i64} {
  func.func @_blur_fir_kernel(%arg0: i32, %arg1: memref<8x16x16xf32, #tpu.memory_space<vmem>>, %arg2: memref<8x16x16xf32, #tpu.memory_space<vmem>>, %arg3: memref<8x19x19xf32, #tpu.memory_space<vmem>>, %arg4: memref<8x19x16xf32, #tpu.memory_space<vmem>>) attributes {dimension_semantics = [#tpu.dimension_semantics<parallel>], iteration_bounds = array<i64: 1>, scalar_prefetch = 0 : i64, scratch_operands = 2 : i64, tpu.core_type = #tpu.core_type<tc>, window_params = [{transform_indices = @transform_0, window_bounds = array<i64: 8, 16, 16>}, {transform_indices = @transform_1, window_bounds = array<i64: 8, 16, 16>}]} {
    %cst = arith.constant 0.000000e+00 : f32
    %0 = vector.broadcast %cst : f32 to vector<8x19x19xf32>
    %c0 = arith.constant 0 : index
    %c0_0 = arith.constant 0 : index
    %c0_1 = arith.constant 0 : index
    %1 = vector.load %arg3[%c0, %c0_0, %c0_1] : memref<8x19x19xf32, #tpu.memory_space<vmem>>, vector<8x19x19xf32>
    tpu.vector_store %arg3[%c0, %c0_0, %c0_1], %0 {strides = array<i32>} : memref<8x19x19xf32, #tpu.memory_space<vmem>>, vector<8x19x19xf32>,
    %c0_2 = arith.constant 0 : index
    %c0_3 = arith.constant 0 : index
    %c0_4 = arith.constant 0 : index
    %2 = vector.load %arg1[%c0_2, %c0_3, %c0_4] : memref<8x16x16xf32, #tpu.memory_space<vmem>>, vector<8x16x16xf32>
    %c0_5 = arith.constant 0 : index
    %c2 = arith.constant 2 : index
    %c2_6 = arith.constant 2 : index
    %3 = vector.load %arg3[%c0_5, %c2, %c2_6] : memref<8x19x19xf32, #tpu.memory_space<vmem>>, vector<8x16x16xf32>
    tpu.vector_store %arg3[%c0_5, %c2, %c2_6], %2 {strides = array<i32>} : memref<8x19x19xf32, #tpu.memory_space<vmem>>, vector<8x16x16xf32>,
    %c0_7 = arith.constant 0 : index
    %c0_8 = arith.constant 0 : index
    %c0_9 = arith.constant 0 : index
    %4 = vector.load %arg3[%c0_7, %c0_8, %c0_9] : memref<8x19x19xf32, #tpu.memory_space<vmem>>, vector<8x19x16xf32>
    %cst_10 = arith.constant 1.250000e-01 : f32
    %5 = vector.broadcast %cst_10 : f32 to vector<8x19x16xf32>
    %6 = arith.mulf %4, %5 : vector<8x19x16xf32>
    %c0_11 = arith.constant 0 : index
    %c0_12 = arith.constant 0 : index
    %c1 = arith.constant 1 : index
    %7 = vector.load %arg3[%c0_11, %c0_12, %c1] : memref<8x19x19xf32, #tpu.memory_space<vmem>>, vector<8x19x16xf32>
    %cst_13 = arith.constant 3.750000e-01 : f32
    %8 = vector.broadcast %cst_13 : f32 to vector<8x19x16xf32>
    %9 = arith.mulf %7, %8 : vector<8x19x16xf32>
    %10 = arith.addf %6, %9 : vector<8x19x16xf32>
    %c0_14 = arith.constant 0 : index
    %c0_15 = arith.constant 0 : index
    %c2_16 = arith.constant 2 : index
    %11 = vector.load %arg3[%c0_14, %c0_15, %c2_16] : memref<8x19x19xf32, #tpu.memory_space<vmem>>, vector<8x19x16xf32>
    %cst_17 = arith.constant 3.750000e-01 : f32
    %12 = vector.broadcast %cst_17 : f32 to vector<8x19x16xf32>
    %13 = arith.mulf %11, %12 : vector<8x19x16xf32>
    %14 = arith.addf %10, %13 : vector<8x19x16xf32>
    %c0_18 = arith.constant 0 : index
    %c0_19 = arith.constant 0 : index
    %c3 = arith.constant 3 : index
    %15 = vector.load %arg3[%c0_18, %c0_19, %c3] : memref<8x19x19xf32, #tpu.memory_space<vmem>>, vector<8x19x16xf32>
    %cst_20 = arith.constant 1.250000e-01 : f32
    %16 = vector.broadcast %cst_20 : f32 to vector<8x19x16xf32>
    %17 = arith.mulf %15, %16 : vector<8x19x16xf32>
    %18 = arith.addf %14, %17 : vector<8x19x16xf32>
    %c0_21 = arith.constant 0 : index
    %c0_22 = arith.constant 0 : index
    %c0_23 = arith.constant 0 : index
    %19 = vector.load %arg4[%c0_21, %c0_22, %c0_23] : memref<8x19x16xf32, #tpu.memory_space<vmem>>, vector<8x19x16xf32>
    tpu.vector_store %arg4[%c0_21, %c0_22, %c0_23], %18 {strides = array<i32>} : memref<8x19x16xf32, #tpu.memory_space<vmem>>, vector<8x19x16xf32>,
    %c0_24 = arith.constant 0 : index
    %c0_25 = arith.constant 0 : index
    %c0_26 = arith.constant 0 : index
    %20 = vector.load %arg4[%c0_24, %c0_25, %c0_26] : memref<8x19x16xf32, #tpu.memory_space<vmem>>, vector<8x16x16xf32>
    %cst_27 = arith.constant 5.000000e-01 : f32
    %21 = vector.broadcast %cst_27 : f32 to vector<8x16x16xf32>
    %22 = arith.mulf %20, %21 : vector<8x16x16xf32>
    %c0_28 = arith.constant 0 : index
    %c1_29 = arith.constant 1 : index
    %c0_30 = arith.constant 0 : index
    %23 = vector.load %arg4[%c0_28, %c1_29, %c0_30] : memref<8x19x16xf32, #tpu.memory_space<vmem>>, vector<8x16x16xf32>
    %cst_31 = arith.constant 1.500000e+00 : f32
    %24 = vector.broadcast %cst_31 : f32 to vector<8x16x16xf32>
    %25 = arith.mulf %23, %24 : vector<8x16x16xf32>
    %26 = arith.addf %22, %25 : vector<8x16x16xf32>
    %c0_32 = arith.constant 0 : index
    %c2_33 = arith.constant 2 : index
    %c0_34 = arith.constant 0 : index
    %27 = vector.load %arg4[%c0_32, %c2_33, %c0_34] : memref<8x19x16xf32, #tpu.memory_space<vmem>>, vector<8x16x16xf32>
    %cst_35 = arith.constant 1.500000e+00 : f32
    %28 = vector.broadcast %cst_35 : f32 to vector<8x16x16xf32>
    %29 = arith.mulf %27, %28 : vector<8x16x16xf32>
    %30 = arith.addf %26, %29 : vector<8x16x16xf32>
    %c0_36 = arith.constant 0 : index
    %c3_37 = arith.constant 3 : index
    %c0_38 = arith.constant 0 : index
    %31 = vector.load %arg4[%c0_36, %c3_37, %c0_38] : memref<8x19x16xf32, #tpu.memory_space<vmem>>, vector<8x16x16xf32>
    %cst_39 = arith.constant 5.000000e-01 : f32
    %32 = vector.broadcast %cst_39 : f32 to vector<8x16x16xf32>
    %33 = arith.mulf %31, %32 : vector<8x16x16xf32>
    %34 = arith.addf %30, %33 : vector<8x16x16xf32>
    %c0_40 = arith.constant 0 : index
    %c0_41 = arith.constant 0 : index
    %c0_42 = arith.constant 0 : index
    %35 = vector.load %arg2[%c0_40, %c0_41, %c0_42] : memref<8x16x16xf32, #tpu.memory_space<vmem>>, vector<8x16x16xf32>
    tpu.vector_store %arg2[%c0_40, %c0_41, %c0_42], %34 {strides = array<i32>} : memref<8x16x16xf32, #tpu.memory_space<vmem>>, vector<8x16x16xf32>,
    return
  }
  func.func @transform_0(%arg0: i32) -> (i32, i32, i32) {
    %c0_i32 = arith.constant 0 : i32
    %c0_i32_0 = arith.constant 0 : i32
    %c0_i32_1 = arith.constant 0 : i32
    return %arg0, %c0_i32, %c0_i32_0 : i32, i32, i32
  }
  func.func @transform_1(%arg0: i32) -> (i32, i32, i32) {
    %c0_i32 = arith.constant 0 : i32
    %c0_i32_0 = arith.constant 0 : i32
    %c0_i32_1 = arith.constant 0 : i32
    return %arg0, %c0_i32, %c0_i32_0 : i32, i32, i32
  }
}

</mosaic_0001>

<llo_original>
// kernel: tpu_custom_call.1
$region0: #{tpu_custom_call.1}
  #allocation0 [shape = 'u32[]', space=smem, size = 0x4, offset = 0x4, fixed_abs, tag = 'smem constant byte address 0x4 - core index']
  #allocation1 [shape = 'u32[144,128]{1,0:T(1,128)}', space=vmem, size = 0x12000, scoped, tag = 'internal scratch']
  #allocation2 [shape = 'f32[8,19,19]{2,1,0:T(8,128)}', space=vmem, size = 0x18000, scoped, tag = 'scratch operand']
  #allocation3 [shape = 'f32[8,19,16]{2,1,0:T(8,128)}', space=vmem, size = 0x18000, scoped, tag = 'scratch operand']
  %s0 = inlined_call_operand.hbm [shape: f32[8,16,16], index: 0, kind: input, shape index: {}]
  %s1 = inlined_call_operand.hbm [shape: f32[8,16,16], index: 1, kind: output, shape index: {}]
  %s2 = sld [smem:[#allocation0]]
  $region18: #{tpu_custom_call.1} parent=0
    _
  %s4 = ssub.s32 1, %s2
  %s5 = scalar_select 0, %s4, %s2
  $region1: #{tpu_custom_call.1} parent=0
    #allocation4 [shape = 'u8[65536]{0}', space=vmem, size = 0x10000, scoped, tag = 'input window, operand 0, single buffered']
    #allocation5 [shape = 's32[1]{0}', space=sflag, size = 0x4, scoped, tag = 'scoped memory for tpu_custom_call.1']
    #allocation6 [shape = 's32[1]{0}', space=sflag, size = 0x4, scoped, tag = 'scoped memory for tpu_custom_call.1']
    #allocation7 [shape = 'u8[65536]{0}', space=vmem, size = 0x10000, scoped, tag = 'output window, operand 0, single buffered']
    %6 = vsyncpa [#allocation5], 0
    %7 = vsyncpa [#allocation6], 0
    // Predicated region
    $region2: #{tpu_custom_call.1} parent=1 // pred_check
      _
    $region3: #{tpu_custom_call.1} parent=1 // pred_check_branch
      %9 = sbr.rel (0) target = $region5
    $region4: #{tpu_custom_call.1} parent=1 // pred_region
      %s11 = ssub.s32 2048, 2048
      %12 = vsyncadd [#allocation5], %s11
      %s13 = sshll.u32 [#allocation4], 4
      %s14 = int_to_ptr.vmem [resolvable:$true] %s13
      %19 = dma.hbm_to_vmem [thread:$0]  %s0, 2048, %s14, [#allocation5], 128, 128, 8
    $region5: #{tpu_custom_call.1} parent=1 // pred_fallthru
      _
    // Predicated region
    $region6: #{tpu_custom_call.1} parent=1 // pred_check
      _
    $region7: #{tpu_custom_call.1} parent=1 // pred_check_branch
      %21 = sbr.rel (0) target = $region9
    $region8: #{tpu_custom_call.1} parent=1 // pred_region
      %22 = dma.done [#allocation5], 2048
    $region9: #{tpu_custom_call.1} parent=1 // pred_fallthru
      _
    %vm23 = vcmask 154624
    %24 = vst.msk [vmem:[#allocation2] sm:$0xff] %vm23, 0.0
    %25 = vst.msk [vmem:[#allocation2 + $0x8] sm:$0xff] %vm23, 0.0
    %vm26 = vcmask 149504
    %27 = vst.msk [vmem:[#allocation2 + $0x10] sm:$0x7] %vm26, 0.0
    %28 = vst.msk [vmem:[#allocation2 + $0x18] sm:$0xff] %vm23, 0.0
    %29 = vst.msk [vmem:[#allocation2 + $0x20] sm:$0xff] %vm23, 0.0
    %30 = vst.msk [vmem:[#allocation2 + $0x28] sm:$0x7] %vm26, 0.0
    %31 = vst.msk [vmem:[#allocation2 + $0x30] sm:$0xff] %vm23, 0.0
    %32 = vst.msk [vmem:[#allocation2 + $0x38] sm:$0xff] %vm23, 0.0
    %33 = vst.msk [vmem:[#allocation2 + $0x40] sm:$0x7] %vm26, 0.0
    %34 = vst.msk [vmem:[#allocation2 + $0x48] sm:$0xff] %vm23, 0.0
    %35 = vst.msk [vmem:[#allocation2 + $0x50] sm:$0xff] %vm23, 0.0
    %36 = vst.msk [vmem:[#allocation2 + $0x58] sm:$0x7] %vm26, 0.0
    %37 = vst.msk [vmem:[#allocation2 + $0x60] sm:$0xff] %vm23, 0.0
    %38 = vst.msk [vmem:[#allocation2 + $0x68] sm:$0xff] %vm23, 0.0
    %39 = vst.msk [vmem:[#allocation2 + $0x70] sm:$0x7] %vm26, 0.0
    %40 = vst.msk [vmem:[#allocation2 + $0x78] sm:$0xff] %vm23, 0.0
    %41 = vst.msk [vmem:[#allocation2 + $0x80] sm:$0xff] %vm23, 0.0
    %42 = vst.msk [vmem:[#allocation2 + $0x88] sm:$0x7] %vm26, 0.0
    %43 = vst.msk [vmem:[#allocation2 + $0x90] sm:$0xff] %vm23, 0.0
    %44 = vst.msk [vmem:[#allocation2 + $0x98] sm:$0xff] %vm23, 0.0
    %45 = vst.msk [vmem:[#allocation2 + $0xa0] sm:$0x7] %vm26, 0.0
    %46 = vst.msk [vmem:[#allocation2 + $0xa8] sm:$0xff] %vm23, 0.0
    %47 = vst.msk [vmem:[#allocation2 + $0xb0] sm:$0xff] %vm23, 0.0
    %48 = vst.msk [vmem:[#allocation2 + $0xb8] sm:$0x7] %vm26, 0.0
    %v49 = vld [vmem:[#allocation4] sm:$0xff]
    %v50 = vld [vmem:[#allocation4 + $0x8] sm:$0xff]
    %v51 = vld [vmem:[#allocation4 + $0x10] sm:$0xff]
    %v52 = vld [vmem:[#allocation4 + $0x18] sm:$0xff]
    %v53 = vld [vmem:[#allocation4 + $0x20] sm:$0xff]
    %v54 = vld [vmem:[#allocation4 + $0x28] sm:$0xff]
    %v55 = vld [vmem:[#allocation4 + $0x30] sm:$0xff]
    %v56 = vld [vmem:[#allocation4 + $0x38] sm:$0xff]
    %v57 = vld [vmem:[#allocation4 + $0x40] sm:$0xff]
    %v58 = vld [vmem:[#allocation4 + $0x48] sm:$0xff]
    %v59 = vld [vmem:[#allocation4 + $0x50] sm:$0xff]
    %v60 = vld [vmem:[#allocation4 + $0x58] sm:$0xff]
    %v61 = vld [vmem:[#allocation4 + $0x60] sm:$0xff]
    %v62 = vld [vmem:[#allocation4 + $0x68] sm:$0xff]
    %v63 = vld [vmem:[#allocation4 + $0x70] sm:$0xff]
    %v64 = vld [vmem:[#allocation4 + $0x78] sm:$0xff]
    %81 = vrot.lane.b32.xlu0 %v49, 2
    %v82 = vpop.permute.xlu0 %81
    %83 = vrot.lane.b32.xlu0 %v50, 2
    %v84 = vpop.permute.xlu0 %83
    %85 = vrot.lane.b32.xlu0 %v51, 2
    %v86 = vpop.permute.xlu0 %85
    %87 = vrot.lane.b32.xlu0 %v52, 2
    %v88 = vpop.permute.xlu0 %87
    %89 = vrot.lane.b32.xlu0 %v53, 2
    %v90 = vpop.permute.xlu0 %89
    %91 = vrot.lane.b32.xlu0 %v54, 2
    %v92 = vpop.permute.xlu0 %91
    %93 = vrot.lane.b32.xlu0 %v55, 2
    %v94 = vpop.permute.xlu0 %93
    %95 = vrot.lane.b32.xlu0 %v56, 2
    %v96 = vpop.permute.xlu0 %95
    %97 = vrot.lane.b32.xlu0 %v57, 2
    %v98 = vpop.permute.xlu0 %97
    %99 = vrot.lane.b32.xlu0 %v58, 2
    %v100 = vpop.permute.xlu0 %99
    %101 = vrot.lane.b32.xlu0 %v59, 2
    %v102 = vpop.permute.xlu0 %101
    %103 = vrot.lane.b32.xlu0 %v60, 2
    %v104 = vpop.permute.xlu0 %103
    %105 = vrot.lane.b32.xlu0 %v61, 2
    %v106 = vpop.permute.xlu0 %105
    %107 = vrot.lane.b32.xlu0 %v62, 2
    %v108 = vpop.permute.xlu0 %107
    %109 = vrot.lane.b32.xlu0 %v63, 2
    %v110 = vpop.permute.xlu0 %109
    %111 = vrot.lane.b32.xlu0 %v64, 2
    %v112 = vpop.permute.xlu0 %111
    %vm129 = vcmask 146448
    %130 = vst.msk [vmem:[#allocation2 + $0x2] sm:$0xff] %vm129, %v82
    %131 = vst.msk [vmem:[#allocation2 + $0xa] sm:$0xff] %vm129, %v84
    %132 = vst.msk [vmem:[#allocation2 + $0x1a] sm:$0xff] %vm129, %v86
    %133 = vst.msk [vmem:[#allocation2 + $0x22] sm:$0xff] %vm129, %v88
    %134 = vst.msk [vmem:[#allocation2 + $0x32] sm:$0xff] %vm129, %v90
    %135 = vst.msk [vmem:[#allocation2 + $0x3a] sm:$0xff] %vm129, %v92
    %136 = vst.msk [vmem:[#allocation2 + $0x4a] sm:$0xff] %vm129, %v94
    %137 = vst.msk [vmem:[#allocation2 + $0x52] sm:$0xff] %vm129, %v96
    %138 = vst.msk [vmem:[#allocation2 + $0x62] sm:$0xff] %vm129, %v98
    %139 = vst.msk [vmem:[#allocation2 + $0x6a] sm:$0xff] %vm129, %v100
    %140 = vst.msk [vmem:[#allocation2 + $0x7a] sm:$0xff] %vm129, %v102
    %141 = vst.msk [vmem:[#allocation2 + $0x82] sm:$0xff] %vm129, %v104
    %142 = vst.msk [vmem:[#allocation2 + $0x92] sm:$0xff] %vm129, %v106
    %143 = vst.msk [vmem:[#allocation2 + $0x9a] sm:$0xff] %vm129, %v108
    %144 = vst.msk [vmem:[#allocation2 + $0xaa] sm:$0xff] %vm129, %v110
    %145 = vst.msk [vmem:[#allocation2 + $0xb2] sm:$0xff] %vm129, %v112
    %v146 = vld [vmem:[#allocation2] sm:$0xff]
    %v147 = vld [vmem:[#allocation2 + $0x8] sm:$0xff]
    %v148 = vld [vmem:[#allocation2 + $0x10] sm:$0x7]
    %v149 = vld [vmem:[#allocation2 + $0x18] sm:$0xff]
    %v150 = vld [vmem:[#allocation2 + $0x20] sm:$0xff]
    %v151 = vld [vmem:[#allocation2 + $0x28] sm:$0x7]
    %v152 = vld [vmem:[#allocation2 + $0x30] sm:$0xff]
    %v153 = vld [vmem:[#allocation2 + $0x38] sm:$0xff]
    %v154 = vld [vmem:[#allocation2 + $0x40] sm:$0x7]
    %v155 = vld [vmem:[#allocation2 + $0x48] sm:$0xff]
    %v156 = vld [vmem:[#allocation2 + $0x50] sm:$0xff]
    %v157 = vld [vmem:[#allocation2 + $0x58] sm:$0x7]
    %v158 = vld [vmem:[#allocation2 + $0x60] sm:$0xff]
    %v159 = vld [vmem:[#allocation2 + $0x68] sm:$0xff]
    %v160 = vld [vmem:[#allocation2 + $0x70] sm:$0x7]
    %v161 = vld [vmem:[#allocation2 + $0x78] sm:$0xff]
    %v162 = vld [vmem:[#allocation2 + $0x80] sm:$0xff]
    %v163 = vld [vmem:[#allocation2 + $0x88] sm:$0x7]
    %v164 = vld [vmem:[#allocation2 + $0x90] sm:$0xff]
    %v165 = vld [vmem:[#allocation2 + $0x98] sm:$0xff]
    %v166 = vld [vmem:[#allocation2 + $0xa0] sm:$0x7]
    %v167 = vld [vmem:[#allocation2 + $0xa8] sm:$0xff]
    %v168 = vld [vmem:[#allocation2 + $0xb0] sm:$0xff]
    %v169 = vld [vmem:[#allocation2 + $0xb8] sm:$0x7]
    %v170 = vmul.f32 %v146, 0.125
    %v171 = vmul.f32 %v147, 0.125
    %v172 = vmul.f32 %v148, 0.125
    %v173 = vmul.f32 %v149, 0.125
    %v174 = vmul.f32 %v150, 0.125
    %v175 = vmul.f32 %v151, 0.125
    %v176 = vmul.f32 %v152, 0.125
    %v177 = vmul.f32 %v153, 0.125
    %v178 = vmul.f32 %v154, 0.125
    %v179 = vmul.f32 %v155, 0.125
    %v180 = vmul.f32 %v156, 0.125
    %v181 = vmul.f32 %v157, 0.125
    %v182 = vmul.f32 %v158, 0.125
    %v183 = vmul.f32 %v159, 0.125
    %v184 = vmul.f32 %v160, 0.125
    %v185 = vmul.f32 %v161, 0.125
    %v186 = vmul.f32 %v162, 0.125
    %v187 = vmul.f32 %v163, 0.125
    %v188 = vmul.f32 %v164, 0.125
    %v189 = vmul.f32 %v165, 0.125
    %v190 = vmul.f32 %v166, 0.125
    %v191 = vmul.f32 %v167, 0.125
    %v192 = vmul.f32 %v168, 0.125
    %v193 = vmul.f32 %v169, 0.125
    %v194 = vmul.f32 %v146, 0.375
    %v195 = vmul.f32 %v147, 0.375
    %v196 = vmul.f32 %v148, 0.375
    %v197 = vmul.f32 %v149, 0.375
    %v198 = vmul.f32 %v150, 0.375
    %v199 = vmul.f32 %v151, 0.375
    %v200 = vmul.f32 %v152, 0.375
    %v201 = vmul.f32 %v153, 0.375
    %v202 = vmul.f32 %v154, 0.375
    %v203 = vmul.f32 %v155, 0.375
    %v204 = vmul.f32 %v156, 0.375
    %v205 = vmul.f32 %v157, 0.375
    %v206 = vmul.f32 %v158, 0.375
    %v207 = vmul.f32 %v159, 0.375
    %v208 = vmul.f32 %v160, 0.375
    %v209 = vmul.f32 %v161, 0.375
    %v210 = vmul.f32 %v162, 0.375
    %v211 = vmul.f32 %v163, 0.375
    %v212 = vmul.f32 %v164, 0.375
    %v213 = vmul.f32 %v165, 0.375
    %v214 = vmul.f32 %v166, 0.375
    %v215 = vmul.f32 %v167, 0.375
    %v216 = vmul.f32 %v168, 0.375
    %v217 = vmul.f32 %v169, 0.375
    %242 = vrot.lane.b32.xlu0 %v194, 127
    %v243 = vpop.permute.xlu0 %242
    %244 = vrot.lane.b32.xlu0 %v195, 127
    %v245 = vpop.permute.xlu0 %244
    %246 = vrot.lane.b32.xlu0 %v196, 127
    %v247 = vpop.permute.xlu0 %246
    %248 = vrot.lane.b32.xlu0 %v197, 127
    %v249 = vpop.permute.xlu0 %248
    %250 = vrot.lane.b32.xlu0 %v198, 127
    %v251 = vpop.permute.xlu0 %250
    %252 = vrot.lane.b32.xlu0 %v199, 127
    %v253 = vpop.permute.xlu0 %252
    %254 = vrot.lane.b32.xlu0 %v200, 127
    %v255 = vpop.permute.xlu0 %254
    %256 = vrot.lane.b32.xlu0 %v201, 127
    %v257 = vpop.permute.xlu0 %256
    %258 = vrot.lane.b32.xlu0 %v202, 127
    %v259 = vpop.permute.xlu0 %258
    %260 = vrot.lane.b32.xlu0 %v203, 127
    %v261 = vpop.permute.xlu0 %260
    %262 = vrot.lane.b32.xlu0 %v204, 127
    %v263 = vpop.permute.xlu0 %262
    %264 = vrot.lane.b32.xlu0 %v205, 127
    %v265 = vpop.permute.xlu0 %264
    %266 = vrot.lane.b32.xlu0 %v206, 127
    %v267 = vpop.permute.xlu0 %266
    %268 = vrot.lane.b32.xlu0 %v207, 127
    %v269 = vpop.permute.xlu0 %268
    %270 = vrot.lane.b32.xlu0 %v208, 127
    %v271 = vpop.permute.xlu0 %270
    %272 = vrot.lane.b32.xlu0 %v209, 127
    %v273 = vpop.permute.xlu0 %272
    %274 = vrot.lane.b32.xlu0 %v210, 127
    %v275 = vpop.permute.xlu0 %274
    %276 = vrot.lane.b32.xlu0 %v211, 127
    %v277 = vpop.permute.xlu0 %276
    %278 = vrot.lane.b32.xlu0 %v212, 127
    %v279 = vpop.permute.xlu0 %278
    %280 = vrot.lane.b32.xlu0 %v213, 127
    %v281 = vpop.permute.xlu0 %280
    %282 = vrot.lane.b32.xlu0 %v214, 127
    %v283 = vpop.permute.xlu0 %282
    %284 = vrot.lane.b32.xlu0 %v215, 127
    %v285 = vpop.permute.xlu0 %284
    %286 = vrot.lane.b32.xlu0 %v216, 127
    %v287 = vpop.permute.xlu0 %286
    %288 = vrot.lane.b32.xlu0 %v217, 127
    %v289 = vpop.permute.xlu0 %288
    %v314 = vadd.f32 %v170, %v243
    %v315 = vadd.f32 %v171, %v245
    %v316 = vadd.f32 %v172, %v247
    %v317 = vadd.f32 %v173, %v249
    %v318 = vadd.f32 %v174, %v251
    %v319 = vadd.f32 %v175, %v253
    %v320 = vadd.f32 %v176, %v255
    %v321 = vadd.f32 %v177, %v257
    %v322 = vadd.f32 %v178, %v259
    %v323 = vadd.f32 %v179, %v261
    %v324 = vadd.f32 %v180, %v263
    %v325 = vadd.f32 %v181, %v265
    %v326 = vadd.f32 %v182, %v267
    %v327 = vadd.f32 %v183, %v269
    %v328 = vadd.f32 %v184, %v271
    %v329 = vadd.f32 %v185, %v273
    %v330 = vadd.f32 %v186, %v275
    %v331 = vadd.f32 %v187, %v277
    %v332 = vadd.f32 %v188, %v279
    %v333 = vadd.f32 %v189, %v281
    %v334 = vadd.f32 %v190, %v283
    %v335 = vadd.f32 %v191, %v285
    %v336 = vadd.f32 %v192, %v287
    %v337 = vadd.f32 %v193, %v289
    %338 = vrot.lane.b32.xlu0 %v194, 126
    %v339 = vpop.permute.xlu0 %338
    %340 = vrot.lane.b32.xlu0 %v195, 126
    %v341 = vpop.permute.xlu0 %340
    %342 = vrot.lane.b32.xlu0 %v196, 126
    %v343 = vpop.permute.xlu0 %342
    %344 = vrot.lane.b32.xlu0 %v197, 126
    %v345 = vpop.permute.xlu0 %344
    %346 = vrot.lane.b32.xlu0 %v198, 126
    %v347 = vpop.permute.xlu0 %346
    %348 = vrot.lane.b32.xlu0 %v199, 126
    %v349 = vpop.permute.xlu0 %348
    %350 = vrot.lane.b32.xlu0 %v200, 126
    %v351 = vpop.permute.xlu0 %350
    %352 = vrot.lane.b32.xlu0 %v201, 126
    %v353 = vpop.permute.xlu0 %352
    %354 = vrot.lane.b32.xlu0 %v202, 126
    %v355 = vpop.permute.xlu0 %354
    %356 = vrot.lane.b32.xlu0 %v203, 126
    %v357 = vpop.permute.xlu0 %356
    %358 = vrot.lane.b32.xlu0 %v204, 126
    %v359 = vpop.permute.xlu0 %358
    %360 = vrot.lane.b32.xlu0 %v205, 126
    %v361 = vpop.permute.xlu0 %360
    %362 = vrot.lane.b32.xlu0 %v206, 126
    %v363 = vpop.permute.xlu0 %362
    %364 = vrot.lane.b32.xlu0 %v207, 126
    %v365 = vpop.permute.xlu0 %364
    %366 = vrot.lane.b32.xlu0 %v208, 126
    %v367 = vpop.permute.xlu0 %366
    %368 = vrot.lane.b32.xlu0 %v209, 126
    %v369 = vpop.permute.xlu0 %368
    %370 = vrot.lane.b32.xlu0 %v210, 126
    %v371 = vpop.permute.xlu0 %370
    %372 = vrot.lane.b32.xlu0 %v211, 126
    %v373 = vpop.permute.xlu0 %372
    %374 = vrot.lane.b32.xlu0 %v212, 126
    %v375 = vpop.permute.xlu0 %374
    %376 = vrot.lane.b32.xlu0 %v213, 126
    %v377 = vpop.permute.xlu0 %376
    %378 = vrot.lane.b32.xlu0 %v214, 126
    %v379 = vpop.permute.xlu0 %378
    %380 = vrot.lane.b32.xlu0 %v215, 126
    %v381 = vpop.permute.xlu0 %380
    %382 = vrot.lane.b32.xlu0 %v216, 126
    %v383 = vpop.permute.xlu0 %382
    %384 = vrot.lane.b32.xlu0 %v217, 126
    %v385 = vpop.permute.xlu0 %384
    %v410 = vadd.f32 %v314, %v339
    %v411 = vadd.f32 %v315, %v341
    %v412 = vadd.f32 %v316, %v343
    %v413 = vadd.f32 %v317, %v345
    %v414 = vadd.f32 %v318, %v347
    %v415 = vadd.f32 %v319, %v349
    %v416 = vadd.f32 %v320, %v351
    %v417 = vadd.f32 %v321, %v353
    %v418 = vadd.f32 %v322, %v355
    %v419 = vadd.f32 %v323, %v357
    %v420 = vadd.f32 %v324, %v359
    %v421 = vadd.f32 %v325, %v361
    %v422 = vadd.f32 %v326, %v363
    %v423 = vadd.f32 %v327, %v365
    %v424 = vadd.f32 %v328, %v367
    %v425 = vadd.f32 %v329, %v369
    %v426 = vadd.f32 %v330, %v371
    %v427 = vadd.f32 %v331, %v373
    %v428 = vadd.f32 %v332, %v375
    %v429 = vadd.f32 %v333, %v377
    %v430 = vadd.f32 %v334, %v379
    %v431 = vadd.f32 %v335, %v381
    %v432 = vadd.f32 %v336, %v383
    %v433 = vadd.f32 %v337, %v385
    %458 = vrot.lane.b32.xlu0 %v170, 125
    %v459 = vpop.permute.xlu0 %458
    %460 = vrot.lane.b32.xlu0 %v171, 125
    %v461 = vpop.permute.xlu0 %460
    %462 = vrot.lane.b32.xlu0 %v172, 125
    %v463 = vpop.permute.xlu0 %462
    %464 = vrot.lane.b32.xlu0 %v173, 125
    %v465 = vpop.permute.xlu0 %464
    %466 = vrot.lane.b32.xlu0 %v174, 125
    %v467 = vpop.permute.xlu0 %466
    %468 = vrot.lane.b32.xlu0 %v175, 125
    %v469 = vpop.permute.xlu0 %468
    %470 = vrot.lane.b32.xlu0 %v176, 125
    %v471 = vpop.permute.xlu0 %470
    %472 = vrot.lane.b32.xlu0 %v177, 125
    %v473 = vpop.permute.xlu0 %472
    %474 = vrot.lane.b32.xlu0 %v178, 125
    %v475 = vpop.permute.xlu0 %474
    %476 = vrot.lane.b32.xlu0 %v179, 125
    %v477 = vpop.permute.xlu0 %476
    %478 = vrot.lane.b32.xlu0 %v180, 125
    %v479 = vpop.permute.xlu0 %478
    %480 = vrot.lane.b32.xlu0 %v181, 125
    %v481 = vpop.permute.xlu0 %480
    %482 = vrot.lane.b32.xlu0 %v182, 125
    %v483 = vpop.permute.xlu0 %482
    %484 = vrot.lane.b32.xlu0 %v183, 125
    %v485 = vpop.permute.xlu0 %484
    %486 = vrot.lane.b32.xlu0 %v184, 125
    %v487 = vpop.permute.xlu0 %486
    %488 = vrot.lane.b32.xlu0 %v185, 125
    %v489 = vpop.permute.xlu0 %488
    %490 = vrot.lane.b32.xlu0 %v186, 125
    %v491 = vpop.permute.xlu0 %490
    %492 = vrot.lane.b32.xlu0 %v187, 125
    %v493 = vpop.permute.xlu0 %492
    %494 = vrot.lane.b32.xlu0 %v188, 125
    %v495 = vpop.permute.xlu0 %494
    %496 = vrot.lane.b32.xlu0 %v189, 125
    %v497 = vpop.permute.xlu0 %496
    %498 = vrot.lane.b32.xlu0 %v190, 125
    %v499 = vpop.permute.xlu0 %498
    %500 = vrot.lane.b32.xlu0 %v191, 125
    %v501 = vpop.permute.xlu0 %500
    %502 = vrot.lane.b32.xlu0 %v192, 125
    %v503 = vpop.permute.xlu0 %502
    %504 = vrot.lane.b32.xlu0 %v193, 125
    %v505 = vpop.permute.xlu0 %504
    %v530 = vadd.f32 %v410, %v459
    %v531 = vadd.f32 %v411, %v461
    %v532 = vadd.f32 %v412, %v463
    %v533 = vadd.f32 %v413, %v465
    %v534 = vadd.f32 %v414, %v467
    %v535 = vadd.f32 %v415, %v469
    %v536 = vadd.f32 %v416, %v471
    %v537 = vadd.f32 %v417, %v473
    %v538 = vadd.f32 %v418, %v475
    %v539 = vadd.f32 %v419, %v477
    %v540 = vadd.f32 %v420, %v479
    %v541 = vadd.f32 %v421, %v481
    %v542 = vadd.f32 %v422, %v483
    %v543 = vadd.f32 %v423, %v485
    %v544 = vadd.f32 %v424, %v487
    %v545 = vadd.f32 %v425, %v489
    %v546 = vadd.f32 %v426, %v491
    %v547 = vadd.f32 %v427, %v493
    %v548 = vadd.f32 %v428, %v495
    %v549 = vadd.f32 %v429, %v497
    %v550 = vadd.f32 %v430, %v499
    %v551 = vadd.f32 %v431, %v501
    %v552 = vadd.f32 %v432, %v503
    %v553 = vadd.f32 %v433, %v505
    %vm554 = vcmask 130048
    %555 = vst.msk [vmem:[#allocation3] sm:$0xff] %vm554, %v530
    %556 = vst.msk [vmem:[#allocation3 + $0x8] sm:$0xff] %vm554, %v531
    %vm557 = vcmask 124928
    %558 = vst.msk [vmem:[#allocation3 + $0x10] sm:$0x7] %vm557, %v532
    %559 = vst.msk [vmem:[#allocation3 + $0x18] sm:$0xff] %vm554, %v533
    %560 = vst.msk [vmem:[#allocation3 + $0x20] sm:$0xff] %vm554, %v534
    %561 = vst.msk [vmem:[#allocation3 + $0x28] sm:$0x7] %vm557, %v535
    %562 = vst.msk [vmem:[#allocation3 + $0x30] sm:$0xff] %vm554, %v536
    %563 = vst.msk [vmem:[#allocation3 + $0x38] sm:$0xff] %vm554, %v537
    %564 = vst.msk [vmem:[#allocation3 + $0x40] sm:$0x7] %vm557, %v538
    %565 = vst.msk [vmem:[#allocation3 + $0x48] sm:$0xff] %vm554, %v539
    %566 = vst.msk [vmem:[#allocation3 + $0x50] sm:$0xff] %vm554, %v540
    %567 = vst.msk [vmem:[#allocation3 + $0x58] sm:$0x7] %vm557, %v541
    %568 = vst.msk [vmem:[#allocation3 + $0x60] sm:$0xff] %vm554, %v542
    %569 = vst.msk [vmem:[#allocation3 + $0x68] sm:$0xff] %vm554, %v543
    %570 = vst.msk [vmem:[#allocation3 + $0x70] sm:$0x7] %vm557, %v544
    %571 = vst.msk [vmem:[#allocation3 + $0x78] sm:$0xff] %vm554, %v545
    %572 = vst.msk [vmem:[#allocation3 + $0x80] sm:$0xff] %vm554, %v546
    %573 = vst.msk [vmem:[#allocation3 + $0x88] sm:$0x7] %vm557, %v547
    %574 = vst.msk [vmem:[#allocation3 + $0x90] sm:$0xff] %vm554, %v548
    %575 = vst.msk [vmem:[#allocation3 + $0x98] sm:$0xff] %vm554, %v549
    %576 = vst.msk [vmem:[#allocation3 + $0xa0] sm:$0x7] %vm557, %v550
    %577 = vst.msk [vmem:[#allocation3 + $0xa8] sm:$0xff] %vm554, %v551
    %578 = vst.msk [vmem:[#allocation3 + $0xb0] sm:$0xff] %vm554, %v552
    %579 = vst.msk [vmem:[#allocation3 + $0xb8] sm:$0x7] %vm557, %v553
    %v580 = vld [vmem:[#allocation3] sm:$0xff]
    %v581 = vld [vmem:[#allocation3 + $0x8] sm:$0xff]
    %v582 = vld [vmem:[#allocation3 + $0x18] sm:$0xff]
    %v583 = vld [vmem:[#allocation3 + $0x20] sm:$0xff]
    %v584 = vld [vmem:[#allocation3 + $0x30] sm:$0xff]
    %v585 = vld [vmem:[#allocation3 + $0x38] sm:$0xff]
    %v586 = vld [vmem:[#allocation3 + $0x48] sm:$0xff]
    %v587 = vld [vmem:[#allocation3 + $0x50] sm:$0xff]
    %v588 = vld [vmem:[#allocation3 + $0x60] sm:$0xff]
    %v589 = vld [vmem:[#allocation3 + $0x68] sm:$0xff]
    %v590 = vld [vmem:[#allocation3 + $0x78] sm:$0xff]
    %v591 = vld [vmem:[#allocation3 + $0x80] sm:$0xff]
    %v592 = vld [vmem:[#allocation3 + $0x90] sm:$0xff]
    %v593 = vld [vmem:[#allocation3 + $0x98] sm:$0xff]
    %v594 = vld [vmem:[#allocation3 + $0xa8] sm:$0xff]
    %v595 = vld [vmem:[#allocation3 + $0xb0] sm:$0xff]
    %v596 = vmul.f32 %v580, 0.5
    %v597 = vmul.f32 %v581, 0.5
    %v598 = vmul.f32 %v582, 0.5
    %v599 = vmul.f32 %v583, 0.5
    %v600 = vmul.f32 %v584, 0.5
    %v601 = vmul.f32 %v585, 0.5
    %v602 = vmul.f32 %v586, 0.5
    %v603 = vmul.f32 %v587, 0.5
    %v604 = vmul.f32 %v588, 0.5
    %v605 = vmul.f32 %v589, 0.5
    %v606 = vmul.f32 %v590, 0.5
    %v607 = vmul.f32 %v591, 0.5
    %v608 = vmul.f32 %v592, 0.5
    %v609 = vmul.f32 %v593, 0.5
    %v610 = vmul.f32 %v594, 0.5
    %v611 = vmul.f32 %v595, 0.5
    %v612 = vld [vmem:[#allocation3 + $0x1] sm:$0xff]
    %v613 = vld [vmem:[#allocation3 + $0x9] sm:$0xff]
    %v614 = vld [vmem:[#allocation3 + $0x19] sm:$0xff]
    %v615 = vld [vmem:[#allocation3 + $0x21] sm:$0xff]
    %v616 = vld [vmem:[#allocation3 + $0x31] sm:$0xff]
    %v617 = vld [vmem:[#allocation3 + $0x39] sm:$0xff]
    %v618 = vld [vmem:[#allocation3 + $0x49] sm:$0xff]
    %v619 = vld [vmem:[#allocation3 + $0x51] sm:$0xff]
    %v620 = vld [vmem:[#allocation3 + $0x61] sm:$0xff]
    %v621 = vld [vmem:[#allocation3 + $0x69] sm:$0xff]
    %v622 = vld [vmem:[#allocation3 + $0x79] sm:$0xff]
    %v623 = vld [vmem:[#allocation3 + $0x81] sm:$0xff]
    %v624 = vld [vmem:[#allocation3 + $0x91] sm:$0xff]
    %v625 = vld [vmem:[#allocation3 + $0x99] sm:$0xff]
    %v626 = vld [vmem:[#allocation3 + $0xa9] sm:$0xff]
    %v627 = vld [vmem:[#allocation3 + $0xb1] sm:$0xff]
    %v628 = vmul.f32 %v612, 1.5
    %v629 = vmul.f32 %v613, 1.5
    %v630 = vmul.f32 %v614, 1.5
    %v631 = vmul.f32 %v615, 1.5
    %v632 = vmul.f32 %v616, 1.5
    %v633 = vmul.f32 %v617, 1.5
    %v634 = vmul.f32 %v618, 1.5
    %v635 = vmul.f32 %v619, 1.5
    %v636 = vmul.f32 %v620, 1.5
    %v637 = vmul.f32 %v621, 1.5
    %v638 = vmul.f32 %v622, 1.5
    %v639 = vmul.f32 %v623, 1.5
    %v640 = vmul.f32 %v624, 1.5
    %v641 = vmul.f32 %v625, 1.5
    %v642 = vmul.f32 %v626, 1.5
    %v643 = vmul.f32 %v627, 1.5
    %v644 = vadd.f32 %v596, %v628
    %v645 = vadd.f32 %v597, %v629
    %v646 = vadd.f32 %v598, %v630
    %v647 = vadd.f32 %v599, %v631
    %v648 = vadd.f32 %v600, %v632
    %v649 = vadd.f32 %v601, %v633
    %v650 = vadd.f32 %v602, %v634
    %v651 = vadd.f32 %v603, %v635
    %v652 = vadd.f32 %v604, %v636
    %v653 = vadd.f32 %v605, %v637
    %v654 = vadd.f32 %v606, %v638
    %v655 = vadd.f32 %v607, %v639
    %v656 = vadd.f32 %v608, %v640
    %v657 = vadd.f32 %v609, %v641
    %v658 = vadd.f32 %v610, %v642
    %v659 = vadd.f32 %v611, %v643
    %v660 = vld [vmem:[#allocation3 + $0x2] sm:$0xff]
    %v661 = vld [vmem:[#allocation3 + $0xa] sm:$0xff]
    %v662 = vld [vmem:[#allocation3 + $0x1a] sm:$0xff]
    %v663 = vld [vmem:[#allocation3 + $0x22] sm:$0xff]
    %v664 = vld [vmem:[#allocation3 + $0x32] sm:$0xff]
    %v665 = vld [vmem:[#allocation3 + $0x3a] sm:$0xff]
    %v666 = vld [vmem:[#allocation3 + $0x4a] sm:$0xff]
    %v667 = vld [vmem:[#allocation3 + $0x52] sm:$0xff]
    %v668 = vld [vmem:[#allocation3 + $0x62] sm:$0xff]
    %v669 = vld [vmem:[#allocation3 + $0x6a] sm:$0xff]
    %v670 = vld [vmem:[#allocation3 + $0x7a] sm:$0xff]
    %v671 = vld [vmem:[#allocation3 + $0x82] sm:$0xff]
    %v672 = vld [vmem:[#allocation3 + $0x92] sm:$0xff]
    %v673 = vld [vmem:[#allocation3 + $0x9a] sm:$0xff]
    %v674 = vld [vmem:[#allocation3 + $0xaa] sm:$0xff]
    %v675 = vld [vmem:[#allocation3 + $0xb2] sm:$0xff]
    %v676 = vmul.f32 %v660, 1.5
    %v677 = vmul.f32 %v661, 1.5
    %v678 = vmul.f32 %v662, 1.5
    %v679 = vmul.f32 %v663, 1.5
    %v680 = vmul.f32 %v664, 1.5
    %v681 = vmul.f32 %v665, 1.5
    %v682 = vmul.f32 %v666, 1.5
    %v683 = vmul.f32 %v667, 1.5
    %v684 = vmul.f32 %v668, 1.5
    %v685 = vmul.f32 %v669, 1.5
    %v686 = vmul.f32 %v670, 1.5
    %v687 = vmul.f32 %v671, 1.5
    %v688 = vmul.f32 %v672, 1.5
    %v689 = vmul.f32 %v673, 1.5
    %v690 = vmul.f32 %v674, 1.5
    %v691 = vmul.f32 %v675, 1.5
    %v692 = vadd.f32 %v644, %v676
    %v693 = vadd.f32 %v645, %v677
    %v694 = vadd.f32 %v646, %v678
    %v695 = vadd.f32 %v647, %v679
    %v696 = vadd.f32 %v648, %v680
    %v697 = vadd.f32 %v649, %v681
    %v698 = vadd.f32 %v650, %v682
    %v699 = vadd.f32 %v651, %v683
    %v700 = vadd.f32 %v652, %v684
    %v701 = vadd.f32 %v653, %v685
    %v702 = vadd.f32 %v654, %v686
    %v703 = vadd.f32 %v655, %v687
    %v704 = vadd.f32 %v656, %v688
    %v705 = vadd.f32 %v657, %v689
    %v706 = vadd.f32 %v658, %v690
    %v707 = vadd.f32 %v659, %v691
    %v708 = vld [vmem:[#allocation3 + $0x3] sm:$0xff]
    %v709 = vld [vmem:[#allocation3 + $0xb] sm:$0xff]
    %v710 = vld [vmem:[#allocation3 + $0x1b] sm:$0xff]
    %v711 = vld [vmem:[#allocation3 + $0x23] sm:$0xff]
    %v712 = vld [vmem:[#allocation3 + $0x33] sm:$0xff]
    %v713 = vld [vmem:[#allocation3 + $0x3b] sm:$0xff]
    %v714 = vld [vmem:[#allocation3 + $0x4b] sm:$0xff]
    %v715 = vld [vmem:[#allocation3 + $0x53] sm:$0xff]
    %v716 = vld [vmem:[#allocation3 + $0x63] sm:$0xff]
    %v717 = vld [vmem:[#allocation3 + $0x6b] sm:$0xff]
    %v718 = vld [vmem:[#allocation3 + $0x7b] sm:$0xff]
    %v719 = vld [vmem:[#allocation3 + $0x83] sm:$0xff]
    %v720 = vld [vmem:[#allocation3 + $0x93] sm:$0xff]
    %v721 = vld [vmem:[#allocation3 + $0x9b] sm:$0xff]
    %v722 = vld [vmem:[#allocation3 + $0xab] sm:$0xff]
    %v723 = vld [vmem:[#allocation3 + $0xb3] sm:$0xff]
    %v724 = vmul.f32 %v708, 0.5
    %v725 = vmul.f32 %v709, 0.5
    %v726 = vmul.f32 %v710, 0.5
    %v727 = vmul.f32 %v711, 0.5
    %v728 = vmul.f32 %v712, 0.5
    %v729 = vmul.f32 %v713, 0.5
    %v730 = vmul.f32 %v714, 0.5
    %v731 = vmul.f32 %v715, 0.5
    %v732 = vmul.f32 %v716, 0.5
    %v733 = vmul.f32 %v717, 0.5
    %v734 = vmul.f32 %v718, 0.5
    %v735 = vmul.f32 %v719, 0.5
    %v736 = vmul.f32 %v720, 0.5
    %v737 = vmul.f32 %v721, 0.5
    %v738 = vmul.f32 %v722, 0.5
    %v739 = vmul.f32 %v723, 0.5
    %v740 = vadd.f32 %v692, %v724
    %v741 = vadd.f32 %v693, %v725
    %v742 = vadd.f32 %v694, %v726
    %v743 = vadd.f32 %v695, %v727
    %v744 = vadd.f32 %v696, %v728
    %v745 = vadd.f32 %v697, %v729
    %v746 = vadd.f32 %v698, %v730
    %v747 = vadd.f32 %v699, %v731
    %v748 = vadd.f32 %v700, %v732
    %v749 = vadd.f32 %v701, %v733
    %v750 = vadd.f32 %v702, %v734
    %v751 = vadd.f32 %v703, %v735
    %v752 = vadd.f32 %v704, %v736
    %v753 = vadd.f32 %v705, %v737
    %v754 = vadd.f32 %v706, %v738
    %v755 = vadd.f32 %v707, %v739
    %756 = vst.msk [vmem:[#allocation7] sm:$0xff] %vm554, %v740
    %757 = vst.msk [vmem:[#allocation7 + $0x8] sm:$0xff] %vm554, %v741
    %758 = vst.msk [vmem:[#allocation7 + $0x10] sm:$0xff] %vm554, %v742
    %759 = vst.msk [vmem:[#allocation7 + $0x18] sm:$0xff] %vm554, %v743
    %760 = vst.msk [vmem:[#allocation7 + $0x20] sm:$0xff] %vm554, %v744
    %761 = vst.msk [vmem:[#allocation7 + $0x28] sm:$0xff] %vm554, %v745
    %762 = vst.msk [vmem:[#allocation7 + $0x30] sm:$0xff] %vm554, %v746
    %763 = vst.msk [vmem:[#allocation7 + $0x38] sm:$0xff] %vm554, %v747
    %764 = vst.msk [vmem:[#allocation7 + $0x40] sm:$0xff] %vm554, %v748
    %765 = vst.msk [vmem:[#allocation7 + $0x48] sm:$0xff] %vm554, %v749
    %766 = vst.msk [vmem:[#allocation7 + $0x50] sm:$0xff] %vm554, %v750
    %767 = vst.msk [vmem:[#allocation7 + $0x58] sm:$0xff] %vm554, %v751
    %768 = vst.msk [vmem:[#allocation7 + $0x60] sm:$0xff] %vm554, %v752
    %769 = vst.msk [vmem:[#allocation7 + $0x68] sm:$0xff] %vm554, %v753
    %770 = vst.msk [vmem:[#allocation7 + $0x70] sm:$0xff] %vm554, %v754
    %771 = vst.msk [vmem:[#allocation7 + $0x78] sm:$0xff] %vm554, %v755
    // Predicated region
    $region10: #{tpu_custom_call.1} parent=1 // pred_check
      _
    $region11: #{tpu_custom_call.1} parent=1 // pred_check_branch
      %773 = sbr.rel (0) target = $region13
    $region12: #{tpu_custom_call.1} parent=1 // pred_region
      %s775 = ssub.s32 2048, 2048
      %776 = vsyncadd [#allocation6], %s775
      %s777 = sshll.u32 [#allocation7], 4
      %s778 = int_to_ptr.vmem [resolvable:$true] %s777
      %783 = dma.vmem_to_hbm [thread:$0]  %s778, 2048, %s1, [#allocation6], 128, 128, 8
    $region13: #{tpu_custom_call.1} parent=1 // pred_fallthru
      _
    // Predicated region
    $region14: #{tpu_custom_call.1} parent=1 // pred_check
      _
    $region15: #{tpu_custom_call.1} parent=1 // pred_check_branch
      %785 = sbr.rel (0) target = $region17
    $region16: #{tpu_custom_call.1} parent=1 // pred_region
      %786 = dma.done [#allocation6], 2048
    $region17: #{tpu_custom_call.1} parent=1 // pred_fallthru
      _
    %787 = vsyncpa [#allocation5], 1
    %788 = vsyncpa [#allocation6], 1

</llo_original>
